<compile_context>
chip_gen: v7x
topology: tpu7x:2x2x1
jax: 0.10.0
libtpu: 0.0.40
codegen_flags: <defaults>
</compile_context>

<pallas_src>
import functools

import numpy as np
import jax
import jax.numpy as jnp
from jax import lax
from jax.experimental import pallas as pl
from jax.experimental.pallas import tpu as pltpu

_EPS = 1e-8  # clamp on the norm product (matches the numpy reference / previous kernel)
# TODO(synk): torch F.cosine_similarity clamps each norm separately (max(||x||, eps));
# this kernel clamps the product, which only differs for near-zero embeddings.


def _ge2e_kernel(w_ref, b_ref, e_ref, spk_col_ref, spk_row_ref, lbl_ref, out_ref,
                 *, m_utt):
    """Single-invocation GE2E loss.

    e_ref:       (B, D) embeddings (any float dtype; matmul accumulates in f32)
    spk_col_ref: (B, 1) int32 speaker index per row  (= row // m_utt)
    spk_row_ref: (1, B) int32 speaker index per column
    lbl_ref:     (B, 1) int32 cross-entropy target class (column within speaker)
    out_ref:     (1, 1) f32 loss
    """
    e = e_ref[...]                       # keep input dtype (bf16 stays bf16 into the MXU)
    B = e.shape[0]
    w = w_ref[0, 0]
    bias = b_ref[0, 0]

    # One Gram matmul on the MXU: G[i, j] = e_i . e_j.  Contraction dim (D) is on the
    # lane axis of both operands -> A @ B^T form, no transpose inserted.
    g = lax.dot_general(e, e, (((1,), (1,)), ((), ())),
                        preferred_element_type=jnp.float32)            # (B, B) f32

    spk_col = spk_col_ref[...]                                          # (B, 1)
    spk_row = spk_row_ref[...]                                          # (1, B)
    same = spk_col == spk_row                                           # (B, B) block-diag mask

    row_id = lax.broadcasted_iota(jnp.int32, (B, B), 0)
    col_id = lax.broadcasted_iota(jnp.int32, (B, B), 1)
    eye = row_id == col_id

    zero = jnp.zeros_like(g)
    g_same = jnp.where(same, g, zero)
    g_diag = jnp.where(eye, g, zero)

    rs_col = jnp.sum(g_same, axis=1, keepdims=True)    # (B, 1) within-speaker row sums
    rs_row = jnp.sum(g_same, axis=0, keepdims=True)    # (1, B) within-speaker col sums (symmetric)
    ne2_col = jnp.sum(g_diag, axis=1, keepdims=True)   # (B, 1) ||e_i||^2 = diag(G)
    d_row = jnp.sum(g_diag, axis=0, keepdims=True)     # (1, B) ||e_j||^2
    tot_row = jnp.sum(jnp.where(same, rs_col, zero),   # (1, B) per-speaker total of G block
                      axis=0, keepdims=True)

    inv_m1 = jnp.float32(1.0 / (m_utt - 1))
    # e_i . c_j for same-speaker pairs (exclusive centroid), derived from G:
    #   dots[i, j] = (rowsum_within(i) - G[i, j]) / (M - 1)
    dots = (rs_col - g) * inv_m1                                        # (B, B)
    # ||c_j||^2 = (tot_spk - 2 * colsum_within(j) + G[j, j]) / (M - 1)^2
    nc2_row = (tot_row - 2.0 * rs_row + d_row) * (inv_m1 * inv_m1)      # (1, B)

    # cosine similarity; clamp the norm product at eps (squared domain, rsqrt -> EUP)
    inv_norm = lax.rsqrt(jnp.maximum(ne2_col * nc2_row, jnp.float32(_EPS * _EPS)))
    sim = w * (dots * inv_norm) + bias                                  # (B, B) logits

    # softmax cross entropy restricted to the M same-speaker columns
    neg_big = jnp.float32(-1e30)
    sim_m = jnp.where(same, sim, neg_big)
    row_max = jnp.max(sim_m, axis=1, keepdims=True)                     # (B, 1)
    lse = row_max + jnp.log(jnp.sum(jnp.exp(sim_m - row_max),
                                    axis=1, keepdims=True))             # (B, 1)

    tgt_col = spk_col * m_utt + lbl_ref[...]                            # (B, 1) global target column
    onehot = tgt_col == col_id                                          # (B, B)
    tgt = jnp.sum(jnp.where(onehot, sim_m, zero), axis=1, keepdims=True)  # (B, 1)

    loss = jnp.sum(lse - tgt, axis=0, keepdims=True) * jnp.float32(1.0 / B)  # (1, 1)
    out_ref[...] = loss


def ge2e_loss(embeddings, labels, w=10.0, b=-5.0, num_speakers=None):
    """embeddings: (B, D) float, labels: (B,) int.  Returns scalar f32 loss.

    Pass `num_speakers` statically to avoid a host sync and allow use under jit.
    """
    B, D = embeddings.shape
    if num_speakers is None:
        # TODO(synk): labels.unique() is data-dependent; this host-side fallback forces a
        # device->host sync and blocks jit (matches torch's eager unique()).
        num_speakers = int(np.unique(np.asarray(labels)).size)
    M = B // num_speakers

    spk = jnp.arange(B, dtype=jnp.int32) // M
    spk_col = spk.reshape(B, 1)
    spk_row = spk.reshape(1, B)
    lbl_col = jnp.asarray(labels, dtype=jnp.int32).reshape(B, 1)
    w_arr = jnp.asarray(w, jnp.float32).reshape(1, 1)
    b_arr = jnp.asarray(b, jnp.float32).reshape(1, 1)

    kernel = functools.partial(_ge2e_kernel, m_utt=M)
    out = pl.pallas_call(
        kernel,
        out_shape=jax.ShapeDtypeStruct((1, 1), jnp.float32),
        in_specs=[
            pl.BlockSpec(memory_space=pltpu.MemorySpace.SMEM),   # w
            pl.BlockSpec(memory_space=pltpu.MemorySpace.SMEM),   # b
            pl.BlockSpec(memory_space=pltpu.MemorySpace.VMEM),   # embeddings (B, D)
            pl.BlockSpec(memory_space=pltpu.MemorySpace.VMEM),   # spk_col (B, 1)
            pl.BlockSpec(memory_space=pltpu.MemorySpace.VMEM),   # spk_row (1, B)
            pl.BlockSpec(memory_space=pltpu.MemorySpace.VMEM),   # labels (B, 1)
        ],
        out_specs=pl.BlockSpec(memory_space=pltpu.MemorySpace.VMEM),
    )(w_arr, b_arr, embeddings, spk_col, spk_row, lbl_col)
    return out[0, 0]


def _reference(embeddings, labels, w=10.0, b=-5.0):
    """Pure-numpy replica of the PyTorch forward, for correctness checking."""
    labels_np = np.asarray(labels)
    n_spk = int(np.unique(labels_np).size)
    B, D = embeddings.shape
    M = B // n_spk
    e = np.asarray(embeddings, np.float32).reshape(n_spk, M, D)
    c = (e.sum(1, keepdims=True) - e) / (M - 1)
    dots = np.einsum('smd,snd->smn', e, c)
    ne = np.linalg.norm(e, axis=-1)
    nc = np.linalg.norm(c, axis=-1)
    sim = w * dots / np.maximum(ne[:, :, None] * nc[:, None, :], _EPS) + b
    sim = sim.reshape(B, M)
    tgt = labels_np.astype(np.int64)
    row_max = sim.max(-1, keepdims=True)
    lse = row_max[:, 0] + np.log(np.exp(sim - row_max).sum(-1))
    return float(np.mean(lse - sim[np.arange(B), tgt]))


if __name__ == "__main__":
    key = jax.random.PRNGKey(0)
    n_spk, M, D = 4, 4, 32                       # B = n_spk * M = 16
    B = n_spk * M
    embeddings = jax.random.normal(key, (B, D), dtype=jnp.float32)
    # labels grouped by speaker (as the .view(B_spk, M, D) in the reference assumes);
    # label values must be < M for the reference cross_entropy to be well defined.
    labels = jnp.repeat(jnp.arange(n_spk, dtype=jnp.int32), M)

    loss = ge2e_loss(embeddings, labels, w=10.0, b=-5.0, num_speakers=n_spk)
    loss = jax.block_until_ready(loss)

    ref = _reference(np.asarray(embeddings), np.asarray(labels), w=10.0, b=-5.0)
    assert np.isfinite(float(loss))
    assert abs(float(loss) - ref) < 2e-4, (float(loss), ref)
    print("KERNEL_OK")
</pallas_src>

<mosaic_0001>
module attributes {stable_mosaic.version = 11 : i64} {
  func.func @_ge2e_kernel(%arg0: memref<1x1xf32, #tpu.memory_space<smem>>, %arg1: memref<1x1xf32, #tpu.memory_space<smem>>, %arg2: memref<16x32xf32, #tpu.memory_space<vmem>>, %arg3: memref<16x1xi32, #tpu.memory_space<vmem>>, %arg4: memref<1x16xi32, #tpu.memory_space<vmem>>, %arg5: memref<16x1xi32, #tpu.memory_space<vmem>>, %arg6: memref<1x1xf32, #tpu.memory_space<vmem>>) attributes {dimension_semantics = [], scalar_prefetch = 0 : i64, scratch_operands = 0 : i64, tpu.core_type = #tpu.core_type<tc>} {
    %c0 = arith.constant 0 : index
    %c0_0 = arith.constant 0 : index
    %0 = vector.load %arg2[%c0, %c0_0] : memref<16x32xf32, #tpu.memory_space<vmem>>, vector<16x32xf32>
    %c0_1 = arith.constant 0 : index
    %c0_2 = arith.constant 0 : index
    %1 = memref.load %arg0[%c0_1, %c0_2] : memref<1x1xf32, #tpu.memory_space<smem>>
    %c0_3 = arith.constant 0 : index
    %c0_4 = arith.constant 0 : index
    %2 = memref.load %arg1[%c0_3, %c0_4] : memref<1x1xf32, #tpu.memory_space<smem>>
    %cst = arith.constant dense<0.000000e+00> : vector<16x16xf32>
    %3 = tpu.matmul %0, %0, %cst {dimension_numbers = #tpu.dot_dimension_numbers<[1], [1], [0], [0], [0, 0, 1, 0], [], []>} : vector<16x32xf32>, vector<16x32xf32>, vector<16x16xf32> -> vector<16x16xf32>
    %c0_5 = arith.constant 0 : index
    %c0_6 = arith.constant 0 : index
    %4 = vector.load %arg3[%c0_5, %c0_6] : memref<16x1xi32, #tpu.memory_space<vmem>>, vector<16x1xi32>
    %c0_7 = arith.constant 0 : index
    %c0_8 = arith.constant 0 : index
    %5 = vector.load %arg4[%c0_7, %c0_8] : memref<1x16xi32, #tpu.memory_space<vmem>>, vector<1x16xi32>
    %6 = vector.broadcast %4 : vector<16x1xi32> to vector<16x16xi32>
    %7 = vector.broadcast %5 : vector<1x16xi32> to vector<16x16xi32>
    %8 = arith.cmpi eq, %6, %7 : vector<16x16xi32>
    %9 = tpu.iota {dimensions = array<i32: 0>} : vector<16x16xi32>
    %10 = tpu.iota {dimensions = array<i32: 1>} : vector<16x16xi32>
    %11 = arith.cmpi eq, %9, %10 : vector<16x16xi32>
    %cst_9 = arith.constant 0.000000e+00 : f32
    %12 = vector.broadcast %cst_9 : f32 to vector<16x16xf32>
    %13 = arith.select %8, %3, %12 : vector<16x16xi1>, vector<16x16xf32>
    %14 = arith.select %11, %3, %12 : vector<16x16xi1>, vector<16x16xf32>
    %cst_10 = arith.constant dense<0.000000e+00> : vector<16xf32>
    %15 = vector.multi_reduction <add>, %13, %cst_10 [1] : vector<16x16xf32> to vector<16xf32>
    %16 = vector.shape_cast %15 : vector<16xf32> to vector<16x1xf32>
    %cst_11 = arith.constant dense<0.000000e+00> : vector<16xf32>
    %17 = vector.multi_reduction <add>, %13, %cst_11 [0] : vector<16x16xf32> to vector<16xf32>
    %18 = vector.shape_cast %17 : vector<16xf32> to vector<1x16xf32>
    %cst_12 = arith.constant dense<0.000000e+00> : vector<16xf32>
    %19 = vector.multi_reduction <add>, %14, %cst_12 [1] : vector<16x16xf32> to vector<16xf32>
    %20 = vector.shape_cast %19 : vector<16xf32> to vector<16x1xf32>
    %cst_13 = arith.constant dense<0.000000e+00> : vector<16xf32>
    %21 = vector.multi_reduction <add>, %14, %cst_13 [0] : vector<16x16xf32> to vector<16xf32>
    %22 = vector.shape_cast %21 : vector<16xf32> to vector<1x16xf32>
    %23 = vector.shape_cast %16 : vector<16x1xf32> to vector<16x1xf32>
    %24 = vector.broadcast %23 : vector<16x1xf32> to vector<16x16xf32>
    %25 = arith.select %8, %24, %12 : vector<16x16xi1>, vector<16x16xf32>
    %cst_14 = arith.constant dense<0.000000e+00> : vector<16xf32>
    %26 = vector.multi_reduction <add>, %25, %cst_14 [0] : vector<16x16xf32> to vector<16xf32>
    %27 = vector.shape_cast %26 : vector<16xf32> to vector<1x16xf32>
    %28 = vector.broadcast %16 : vector<16x1xf32> to vector<16x16xf32>
    %29 = arith.subf %28, %3 : vector<16x16xf32>
    %cst_15 = arith.constant 0.333333343 : f32
    %30 = vector.broadcast %cst_15 : f32 to vector<16x16xf32>
    %31 = arith.mulf %29, %30 : vector<16x16xf32>
    %cst_16 = arith.constant 2.000000e+00 : f32
    %32 = vector.broadcast %cst_16 : f32 to vector<1x16xf32>
    %33 = arith.mulf %32, %18 : vector<1x16xf32>
    %34 = arith.subf %27, %33 : vector<1x16xf32>
    %35 = arith.addf %34, %22 : vector<1x16xf32>
    %cst_17 = arith.constant 0.333333343 : f32
    %cst_18 = arith.constant 0.333333343 : f32
    %36 = arith.mulf %cst_17, %cst_18 : f32
    %37 = vector.broadcast %36 : f32 to vector<1x16xf32>
    %38 = arith.mulf %35, %37 : vector<1x16xf32>
    %39 = vector.broadcast %20 : vector<16x1xf32> to vector<16x16xf32>
    %40 = vector.broadcast %38 : vector<1x16xf32> to vector<16x16xf32>
    %41 = arith.mulf %39, %40 : vector<16x16xf32>
    %cst_19 = arith.constant 1.000000e-16 : f32
    %42 = vector.broadcast %cst_19 : f32 to vector<16x16xf32>
    %43 = arith.maximumf %41, %42 : vector<16x16xf32>
    %44 = math.rsqrt %43 : vector<16x16xf32>
    %45 = arith.mulf %31, %44 : vector<16x16xf32>
    %46 = vector.broadcast %1 : f32 to vector<16x16xf32>
    %47 = arith.mulf %46, %45 : vector<16x16xf32>
    %48 = vector.broadcast %2 : f32 to vector<16x16xf32>
    %49 = arith.addf %47, %48 : vector<16x16xf32>
    %cst_20 = arith.constant -1.000000e+30 : f32
    %50 = vector.broadcast %cst_20 : f32 to vector<16x16xf32>
    %51 = arith.select %8, %49, %50 : vector<16x16xi1>, vector<16x16xf32>
    %cst_21 = arith.constant dense<0xFF800000> : vector<16xf32>
    %52 = vector.multi_reduction <maximumf>, %51, %cst_21 [1] : vector<16x16xf32> to vector<16xf32>
    %53 = vector.shape_cast %52 : vector<16xf32> to vector<16x1xf32>
    %54 = vector.broadcast %53 : vector<16x1xf32> to vector<16x16xf32>
    %55 = arith.subf %51, %54 : vector<16x16xf32>
    %56 = math.exp %55 : vector<16x16xf32>
    %cst_22 = arith.constant dense<0.000000e+00> : vector<16xf32>
    %57 = vector.multi_reduction <add>, %56, %cst_22 [1] : vector<16x16xf32> to vector<16xf32>
    %58 = vector.shape_cast %57 : vector<16xf32> to vector<16x1xf32>
    %59 = math.log %58 : vector<16x1xf32>
    %60 = arith.addf %53, %59 : vector<16x1xf32>
    %c4_i32 = arith.constant 4 : i32
    %61 = vector.broadcast %c4_i32 : i32 to vector<16x1xi32>
    %62 = arith.muli %4, %61 : vector<16x1xi32>
    %c0_23 = arith.constant 0 : index
    %c0_24 = arith.constant 0 : index
    %63 = vector.load %arg5[%c0_23, %c0_24] : memref<16x1xi32, #tpu.memory_space<vmem>>, vector<16x1xi32>
    %64 = arith.addi %62, %63 : vector<16x1xi32>
    %65 = vector.broadcast %64 : vector<16x1xi32> to vector<16x16xi32>
    %66 = arith.cmpi eq, %65, %10 : vector<16x16xi32>
    %67 = arith.select %66, %51, %12 : vector<16x16xi1>, vector<16x16xf32>
    %cst_25 = arith.constant dense<0.000000e+00> : vector<16xf32>
    %68 = vector.multi_reduction <add>, %67, %cst_25 [1] : vector<16x16xf32> to vector<16xf32>
    %69 = vector.shape_cast %68 : vector<16xf32> to vector<16x1xf32>
    %70 = arith.subf %60, %69 : vector<16x1xf32>
    %cst_26 = arith.constant dense<0.000000e+00> : vector<1xf32>
    %71 = vector.multi_reduction <add>, %70, %cst_26 [0] : vector<16x1xf32> to vector<1xf32>
    %72 = vector.shape_cast %71 : vector<1xf32> to vector<1x1xf32>
    %cst_27 = arith.constant 6.250000e-02 : f32
    %73 = vector.broadcast %cst_27 : f32 to vector<1x1xf32>
    %74 = arith.mulf %72, %73 : vector<1x1xf32>
    %c0_28 = arith.constant 0 : index
    %c0_29 = arith.constant 0 : index
    %75 = vector.load %arg6[%c0_28, %c0_29] : memref<1x1xf32, #tpu.memory_space<vmem>>, vector<1x1xf32>
    tpu.vector_store %arg6[%c0_28, %c0_29], %74 {strides = array<i32>} : memref<1x1xf32, #tpu.memory_space<vmem>>, vector<1x1xf32>,
    return
  }
}

</mosaic_0001>

<llo_original>
// kernel: tpu_custom_call.1
$region0: #{tpu_custom_call.1}
  #allocation0 [shape = 'u32[]', space=smem, size = 0x4, offset = 0x4, fixed_abs, tag = 'smem constant byte address 0x4 - core index']
  #allocation1 [shape = 'u32[144,128]{1,0:T(1,128)}', space=vmem, size = 0x12000, scoped, tag = 'internal scratch']
  #allocation2 [shape = 'f32[1,1]{1,0:T(1,128)S(6)}', space=smem, size = 0x200, scoped, tag = 'scoped memory for tpu_custom_call.1']
  #allocation3 [shape = 'f32[1,1]{1,0:T(1,128)S(6)}', space=smem, size = 0x200, scoped, tag = 'scoped memory for tpu_custom_call.1']
  %s0 = inlined_call_operand.<no memory space> [shape: f32[1,1], index: 0, kind: input, shape index: {}]
  %s1 = inlined_call_operand.<no memory space> [shape: f32[1,1], index: 1, kind: input, shape index: {}]
  %s2 = inlined_call_operand.vmem [shape: f32[16,32], index: 2, kind: input, shape index: {}]
  %s3 = inlined_call_operand.vmem [shape: s32[16,1], index: 3, kind: input, shape index: {}]
  %s4 = inlined_call_operand.vmem [shape: s32[1,16], index: 4, kind: input, shape index: {}]
  %s5 = inlined_call_operand.vmem [shape: s32[16,1], index: 5, kind: input, shape index: {}]
  %s6 = inlined_call_operand.hbm [shape: f32[1,1], index: 6, kind: output, shape index: {}]
  %s7 = sld [smem:[#allocation0]]
  $region34: #{tpu_custom_call.1} parent=0
    _
  %s9 = ssub.s32 1, %s7
  %s10 = scalar_select 0, %s9, %s7
  %11 = sst [smem:[#allocation2]] %s0
  %12 = sst [smem:[#allocation3]] %s1
  $region1: #{tpu_custom_call.1} parent=0
    #allocation4 [shape = 'u8[512]{0}', space=vmem, size = 0x400, scoped, tag = 'output window, operand 0, single buffered']
    #allocation5 [shape = 's32[1]{0}', space=sflag, size = 0x4, scoped, tag = 'scoped memory for tpu_custom_call.1']
    %13 = vsyncpa [#allocation5], 0
    // Predicated region
    $region2: #{tpu_custom_call.1} parent=1 // pred_check
      _
    $region3: #{tpu_custom_call.1} parent=1 // pred_check_branch
      %15 = sbr.rel (0) target = $region5
    $region4: #{tpu_custom_call.1} parent=1 // pred_region
      _
    $region5: #{tpu_custom_call.1} parent=1 // pred_fallthru
      _
    // Predicated region
    $region6: #{tpu_custom_call.1} parent=1 // pred_check
      _
    $region7: #{tpu_custom_call.1} parent=1 // pred_check_branch
      %17 = sbr.rel (0) target = $region9
    $region8: #{tpu_custom_call.1} parent=1 // pred_region
      _
    $region9: #{tpu_custom_call.1} parent=1 // pred_fallthru
      _
    // Predicated region
    $region10: #{tpu_custom_call.1} parent=1 // pred_check
      _
    $region11: #{tpu_custom_call.1} parent=1 // pred_check_branch
      %19 = sbr.rel (0) target = $region13
    $region12: #{tpu_custom_call.1} parent=1 // pred_region
      _
    $region13: #{tpu_custom_call.1} parent=1 // pred_fallthru
      _
    // Predicated region
    $region14: #{tpu_custom_call.1} parent=1 // pred_check
      _
    $region15: #{tpu_custom_call.1} parent=1 // pred_check_branch
      %21 = sbr.rel (0) target = $region17
    $region16: #{tpu_custom_call.1} parent=1 // pred_region
      _
    $region17: #{tpu_custom_call.1} parent=1 // pred_fallthru
      _
    // Predicated region
    $region18: #{tpu_custom_call.1} parent=1 // pred_check
      _
    $region19: #{tpu_custom_call.1} parent=1 // pred_check_branch
      %23 = sbr.rel (0) target = $region21
    $region20: #{tpu_custom_call.1} parent=1 // pred_region
      _
    $region21: #{tpu_custom_call.1} parent=1 // pred_fallthru
      _
    // Predicated region
    $region22: #{tpu_custom_call.1} parent=1 // pred_check
      _
    $region23: #{tpu_custom_call.1} parent=1 // pred_check_branch
      %25 = sbr.rel (0) target = $region25
    $region24: #{tpu_custom_call.1} parent=1 // pred_region
      _
    $region25: #{tpu_custom_call.1} parent=1 // pred_fallthru
      _
    %v26 = vld [vmem:[%s2] sm:$0xff]
    %v27 = vld [vmem:[%s2 + $0x8] sm:$0xff]
    %s28 = sld [smem:[#allocation2]]
    %s29 = sld [smem:[#allocation3]]
    %vm30 = vcmask 261120
    %v32 = vsel %vm30, %v26, 0
    %v35 = vsel %vm30, %v27, 0
    %37 = vmatprep.subr.mxu0 0.0
    %38 = vmatpush1.xpose.msra.mxu0 %v32
    %39 = vmatprep.subr.mxu0 0.0
    %40 = vmatpush1.xpose.msra.mxu0 %v35
    %41 = vmatprep.subr.mxu0 0.0
    %42 = vmatpush1.xpose.msra.mxu0 0.0
    %43 = vmatprep.subr.mxu0 0.0
    %44 = vmatpush1.xpose.msra.mxu0 0.0
    %45 = vmatprep.subr.mxu0 0.0
    %46 = vmatpush1.xpose.msra.mxu0 0.0
    %47 = vmatprep.subr.mxu0 0.0
    %48 = vmatpush1.xpose.msra.mxu0 0.0
    %49 = vmatprep.subr.mxu0 0.0
    %50 = vmatpush1.xpose.msra.mxu0 0.0
    %51 = vmatprep.subr.mxu0 0.0
    %52 = vmatpush1.xpose.msra.mxu0 0.0
    %53 = vmatprep.subr.mxu0 0.0
    %54 = vmatpush1.xpose.msra.mxu0 0.0
    %55 = vmatprep.subr.mxu0 0.0
    %56 = vmatpush1.xpose.msra.mxu0 0.0
    %57 = vmatprep.subr.mxu0 0.0
    %58 = vmatpush1.xpose.msra.mxu0 0.0
    %59 = vmatprep.subr.mxu0 0.0
    %60 = vmatpush1.xpose.msra.mxu0 0.0
    %61 = vmatprep.subr.mxu0 0.0
    %62 = vmatpush1.xpose.msra.mxu0 0.0
    %63 = vmatprep.subr.mxu0 0.0
    %64 = vmatpush1.xpose.msra.mxu0 0.0
    %65 = vmatprep.subr.mxu0 0.0
    %66 = vmatpush1.xpose.msra.mxu0 0.0
    %67 = vmatprep.subr.mxu0 0.0
    %68 = vmatpush1.xpose.msra.mxu0 0.0
    %69 = vmatprep.subr.mxu0 0.0
    %70 = vmatpush1.xpose.msra.mxu0 0.0
    %71 = vmatprep.subr.mxu0 0.0
    %72 = vmatpush1.xpose.msra.mxu0 0.0
    %73 = vmatprep.subr.mxu0 0.0
    %74 = vmatpush1.xpose.msra.mxu0 0.0
    %75 = vmatprep.subr.mxu0 0.0
    %76 = vmatpush1.xpose.msra.mxu0 0.0
    %77 = vmatprep.subr.mxu0 0.0
    %78 = vmatpush1.xpose.msra.mxu0 0.0
    %79 = vmatprep.subr.mxu0 0.0
    %80 = vmatpush1.xpose.msra.mxu0 0.0
    %81 = vmatprep.subr.mxu0 0.0
    %82 = vmatpush1.xpose.msra.mxu0 0.0
    %83 = vmatprep.subr.mxu0 0.0
    %84 = vmatpush1.xpose.msra.mxu0 0.0
    %85 = vmatprep.subr.mxu0 0.0
    %86 = vmatpush1.xpose.msra.mxu0 0.0
    %87 = vmatprep.subr.mxu0 0.0
    %88 = vmatpush1.xpose.msra.mxu0 0.0
    %89 = vmatprep.subr.mxu0 0.0
    %90 = vmatpush1.xpose.msra.mxu0 0.0
    %91 = vmatprep.subr.mxu0 0.0
    %92 = vmatpush1.xpose.msra.mxu0 0.0
    %93 = vmatprep.subr.mxu0 0.0
    %94 = vmatpush1.xpose.msra.mxu0 0.0
    %95 = vmatprep.subr.mxu0 0.0
    %96 = vmatpush1.xpose.msra.mxu0 0.0
    %97 = vmatprep.subr.mxu0 0.0
    %98 = vmatpush1.xpose.msra.mxu0 0.0
    %99 = vmatprep.subr.mxu0 0.0
    %100 = vmatpush1.xpose.msra.mxu0 0.0
    %101 = vmatprep.mubr.f32.mxu0 0.0
    %102 = vmatmul.mubr.f32.gmra.mrb[0].mxu0 %v32
    %v103 = vpop.f32.mrb[0].mxu0
    %v104 = vadd.f32 0.0, %v103
    %v105 = vpop.f32.mrb[0].mxu0
    %106 = vmatprep.mubr.f32.mxu0 0.0
    %107 = vmatmul.mubr.f32.gmra.mrb[0].mxu0 %v35
    %v108 = vpop.f32.mrb[0].mxu0
    %v109 = vadd.f32 0.0, %v108
    %v110 = vpop.f32.mrb[0].mxu0
    %111 = vdwg.mxu0
    %v112 = vld [vmem:[%s3] sm:$0xff]
    %v113 = vld [vmem:[%s3 + $0x8] sm:$0xff]
    %v114 = vld [vmem:[%s4] sm:$0x1]
    %115 = vset.pattern.permute.xlu0 0
    %116 = vperm.xlu0 %115, %v112
    %v117 = vpop.permute.xlu0 %116
    %118 = vset.pattern.permute.xlu0 0
    %119 = vperm.xlu0 %118, %v113
    %v120 = vpop.permute.xlu0 %119
    %v121 = vlaneseq
    %v122 = vshrl.u32 %v121, 7
    %v123 = vsub.s32 0, %v122
    %v124 = vrot.slane %v114, %v123
    %vm125 = vcmp.eq.s32.totalorder %v117, %v124
    %vm126 = vcmp.eq.s32.totalorder %v120, %v124
    %v127 = vlaneseq
    %v128 = vshrl.u32 %v127, 7
    %v129 = vadd.s32 %v128, 8
    %v130 = vlaneseq
    %v131 = vand.u32 %v130, 127
    %vm132 = vcmp.eq.s32.totalorder %v128, %v131
    %vm133 = vcmp.eq.s32.totalorder %v129, %v131
    %v134 = vsel %vm125, %v104, 0.0
    %v135 = vsel %vm126, %v109, 0.0
    %v136 = vsel %vm132, %v104, 0.0
    %v137 = vsel %vm133, %v109, 0.0
    %vm138 = vcmask 130048
    %v139 = vsel %vm138, %v134, 0.0
    %140 = vadd.xlane.f32.xlu0 %v139
    %v141 = vpop.xlane.xlu0 %140
    %v142 = vsel %vm138, %v135, 0.0
    %143 = vadd.xlane.f32.xlu0 %v142
    %v144 = vpop.xlane.xlu0 %143
    %v145 = vadd.f32 %v139, %v142
    %v146 = vrot.slane %v145, 4
    %v147 = vadd.f32 %v145, %v146
    %v148 = vrot.slane %v147, 2
    %v149 = vadd.f32 %v147, %v148
    %v150 = vrot.slane %v149, 1
    %v151 = vadd.f32 %v149, %v150
    %v152 = vsel %vm138, %v136, 0.0
    %153 = vadd.xlane.f32.xlu0 %v152
    %v154 = vpop.xlane.xlu0 %153
    %v155 = vsel %vm138, %v137, 0.0
    %156 = vadd.xlane.f32.xlu0 %v155
    %v157 = vpop.xlane.xlu0 %156
    %v158 = vadd.f32 %v152, %v155
    %v159 = vrot.slane %v158, 4
    %v160 = vadd.f32 %v158, %v159
    %v161 = vrot.slane %v160, 2
    %v162 = vadd.f32 %v160, %v161
    %v163 = vrot.slane %v162, 1
    %v164 = vadd.f32 %v162, %v163
    %v165 = vsel %vm125, %v141, 0.0
    %v166 = vsel %vm126, %v144, 0.0
    %v167 = vsel %vm138, %v165, 0.0
    %v168 = vsel %vm138, %v166, 0.0
    %v169 = vadd.f32 %v167, %v168
    %v170 = vrot.slane %v169, 4
    %v171 = vadd.f32 %v169, %v170
    %v172 = vrot.slane %v171, 2
    %v173 = vadd.f32 %v171, %v172
    %v174 = vrot.slane %v173, 1
    %v175 = vadd.f32 %v173, %v174
    %v176 = vsub.f32 %v141, %v104
    %v177 = vsub.f32 %v144, %v109
    %v178 = vmul.f32 %v176, 0.33333334
    %v179 = vmul.f32 %v177, 0.33333334
    %v180 = vmul.f32 %v151, 2.0
    %v181 = vsub.f32 %v175, %v180
    %v182 = vadd.f32 %v181, %v164
    %v183 = vmul.f32 %v182, 0.11111112
    %v184 = vmul.f32 %v154, %v183
    %v185 = vmul.f32 %v157, %v183
    %v186 = vmax.f32 %v184, 1e-16
    %v187 = vmax.f32 %v185, 1e-16
    %v188 = vrsqrt.pop %v186
    %v189 = vrsqrt.pop %v187
    %v190 = vmul.f32 %v178, %v188
    %v191 = vmul.f32 %v179, %v189
    %v192 = vstv %s28
    %v193 = vmul.f32 %v192, %v190
    %v194 = vmul.f32 %v192, %v191
    %v195 = vstv %s29
    %v196 = vadd.f32 %v193, %v195
    %v197 = vadd.f32 %v194, %v195
    %v198 = vsel %vm125, %v196, -1e+30
    %v199 = vsel %vm126, %v197, -1e+30
    %v200 = vsel %vm138, %v198, -inf
    %201 = vmax.xlane.f32.xlu0 %v200
    %v202 = vpop.xlane.xlu0 %201
    %v203 = vsel %vm138, %v199, -inf
    %204 = vmax.xlane.f32.xlu0 %v203
    %v205 = vpop.xlane.xlu0 %204
    %v206 = vsub.f32 %v198, %v202
    %v207 = vsub.f32 %v199, %v205
    %v208 = vmul.f32 %v206, 1.442695
    %v209 = vpow.pop %v208
    %v210 = vmul.f32 %v207, 1.442695
    %v211 = vpow.pop %v210
    %v212 = vsel %vm138, %v209, 0.0
    %213 = vadd.xlane.f32.xlu0 %v212
    %v214 = vpop.xlane.xlu0 %213
    %v215 = vsel %vm138, %v211, 0.0
    %216 = vadd.xlane.f32.xlu0 %v215
    %v217 = vpop.xlane.xlu0 %216
    %v218 = vlog2.pop %v214
    %v219 = vmul.f32 %v218, 0.6931472
    %v220 = vlog2.pop %v217
    %v221 = vmul.f32 %v220, 0.6931472
    %v222 = vadd.f32 %v202, %v219
    %v223 = vadd.f32 %v205, %v221
    %v224 = vmul.u32 %v112, 4
    %v225 = vmul.u32 %v113, 4
    %v226 = vld [vmem:[%s5] sm:$0xff]
    %v227 = vld [vmem:[%s5 + $0x8] sm:$0xff]
    %v228 = vadd.s32 %v224, %v226
    %v229 = vadd.s32 %v225, %v227
    %230 = vset.pattern.permute.xlu0 0
    %231 = vperm.xlu0 %230, %v228
    %v232 = vpop.permute.xlu0 %231
    %233 = vset.pattern.permute.xlu0 0
    %234 = vperm.xlu0 %233, %v229
    %v235 = vpop.permute.xlu0 %234
    %vm236 = vcmp.eq.s32.totalorder %v232, %v131
    %vm237 = vcmp.eq.s32.totalorder %v235, %v131
    %v238 = vsel %vm236, %v198, 0.0
    %v239 = vsel %vm237, %v199, 0.0
    %v240 = vsel %vm138, %v238, 0.0
    %241 = vadd.xlane.f32.xlu0 %v240
    %v242 = vpop.xlane.xlu0 %241
    %v243 = vsel %vm138, %v239, 0.0
    %244 = vadd.xlane.f32.xlu0 %v243
    %v245 = vpop.xlane.xlu0 %244
    %v246 = vsub.f32 %v222, %v242
    %v247 = vsub.f32 %v223, %v245
    %v248 = vadd.f32 %v246, %v247
    %v249 = vrot.slane %v248, 4
    %v250 = vadd.f32 %v248, %v249
    %v251 = vrot.slane %v250, 2
    %v252 = vadd.f32 %v250, %v251
    %v253 = vrot.slane %v252, 1
    %v254 = vadd.f32 %v252, %v253
    %v255 = vmul.f32 %v254, 0.0625
    %vm256 = vcmask 0
    %257 = vst.msk [vmem:[#allocation4] sm:$0x1] %vm256, %v255
    // Predicated region
    $region26: #{tpu_custom_call.1} parent=1 // pred_check
      _
    $region27: #{tpu_custom_call.1} parent=1 // pred_check_branch
      %259 = sbr.rel (0) target = $region29
    $region28: #{tpu_custom_call.1} parent=1 // pred_region
      %s261 = ssub.s32 16, 16
      %262 = vsyncadd [#allocation5], %s261
      %s264 = sshll.u32 [#allocation4], 4
      %s265 = int_to_ptr.vmem [resolvable:$true] %s264
      %267 = dma.vmem_to_hbm [thread:$0]  %s265, 16, %s6, [#allocation5]
    $region29: #{tpu_custom_call.1} parent=1 // pred_fallthru
      _
    // Predicated region
    $region30: #{tpu_custom_call.1} parent=1 // pred_check
      _
    $region31: #{tpu_custom_call.1} parent=1 // pred_check_branch
      %269 = sbr.rel (0) target = $region33
    $region32: #{tpu_custom_call.1} parent=1 // pred_region
      %270 = dma.done [#allocation5], 16
    $region33: #{tpu_custom_call.1} parent=1 // pred_fallthru
      _
    %271 = vsyncpa [#allocation5], 1

</llo_original>
